<compile_context>
chip_gen: v5e
topology: v5e:2x2
jax: 0.10.0
libtpu: 0.0.40
codegen_flags: <defaults>
</compile_context>

<pallas_src>
from typing import NamedTuple

import jax
import jax.numpy as jnp
from jax.experimental import pallas as pl
from jax.experimental.pallas import tpu as pltpu

# Conservative vs. the 16-32 MiB default scoped VMEM across v5e/v6e/v7x
# (leaves headroom for double-buffered tiles without touching vmem_limit_bytes).
_VMEM_BUDGET = 12 * 1024 * 1024
_LANE = 128


def _round_up(x, m):
    return ((x + m - 1) // m) * m


class UpSamplerParams(NamedTuple):
    w_packed: jax.Array  # (K_eff, N_eff) = (pack*cin, pack*cout); forward is relu(x_packed @ w_packed)
    pack: int            # rows of x packed per 128-lane slab
    cin: int
    cout: int


def prepare_upsampler_params(w, *, compute_dtype=jnp.bfloat16):
    """One-time weight prep (hoisted out of the per-call forward).

    w: (cout, cin) float weight in PyTorch nn.Linear layout.
    Returns the transposed (and, for small channel counts, block-diagonally
    packed) weight in `compute_dtype`.
    """
    cout, cin = w.shape
    wt = w.T.astype(compute_dtype)  # (cin, cout)

    # Block-diagonal packing for small channel counts (e.g. cin = 32): pack
    # P = 128 // cin rows of x into one lane-dense 128-wide row and replicate
    # the (cin, cout) block P times along the diagonal.
    if cin < _LANE and _LANE % cin == 0:
        pack = _LANE // cin
        w_bd = jnp.zeros((pack * cin, pack * cout), dtype=compute_dtype)
        for p in range(pack):
            w_bd = w_bd.at[p * cin:(p + 1) * cin, p * cout:(p + 1) * cout].set(wt)
        wt = w_bd
    else:
        pack = 1

    return UpSamplerParams(w_packed=wt, pack=pack, cin=cin, cout=cout)


def _upsampler_kernel(x_ref, w_ref, o_ref):
    # x_ref: (tm, K)   w_ref: (K, tn)   o_ref: (tm, tn)
    y = jnp.dot(x_ref[...], w_ref[...], preferred_element_type=jnp.float32)
    o_ref[...] = jnp.maximum(y, 0.0).astype(o_ref.dtype)


def upsampler_forward(params: UpSamplerParams, x, *, tm=2048, tn=None):
    """relu(x @ W^T) with no bias.  x: (..., cin); output: (..., cout).

    For best performance supply x already in the weight's compute dtype
    (e.g. bf16) so the wrapper cast below is a no-op.
    """
    cin, cout, pack = params.cin, params.cout, params.pack
    w_packed = params.w_packed
    k_eff, n_eff = w_packed.shape
    compute_dtype = w_packed.dtype
    out_dtype = x.dtype

    lead = x.shape[:-1]
    assert x.shape[-1] == cin, (x.shape, cin)
    x2d = x.reshape(-1, cin).astype(compute_dtype)  # identity if x already compute_dtype
    m = x2d.shape[0]

    # Pack `pack` rows into one lane-dense 128-wide row.  M is padded only to
    # a multiple of `pack` (a handful of rows) and only when actually needed —
    # never to a multiple of the M tile.
    m_pad = _round_up(m, pack)
    if m_pad != m:
        x2d = jnp.zeros((m_pad, cin), dtype=compute_dtype).at[:m].set(x2d)
    xp = x2d.reshape(m_pad // pack, k_eff)  # contiguous reshape: free
    pm = xp.shape[0]

    x_item = xp.dtype.itemsize
    w_item = w_packed.dtype.itemsize
    o_item = jnp.dtype(out_dtype).itemsize

    # ---- N tiling: keep the full weight VMEM-resident across all M tiles when
    # it comfortably fits (always true for small channel counts); otherwise
    # tile Cout so the footprint fits v7x's smaller VMEM.
    w_bytes = k_eff * n_eff * w_item
    if tn is None:
        tn_eff = n_eff if 2 * w_bytes <= _VMEM_BUDGET // 2 else min(n_eff, 512)
    else:
        tn_eff = min(tn, n_eff)
    n_tiles = pl.cdiv(n_eff, tn_eff)
    w_tile_bytes = 2 * k_eff * tn_eff * w_item  # double-buffered by the pipeline

    # ---- M tiling: ragged last tile is handled by Pallas (garbage rows are
    # computed but never stored), so grid = cdiv with no pad/slice.
    if pm < 16:
        tm_eff = pm  # single small tile; block == full array dim (allowed)
    else:
        # >=2 tiles for mid-size M so v7x can shard the parallel axis across
        # both TensorCores (no effect on single-TC v5e/v6e).
        tm_eff = min(tm, _round_up(pl.cdiv(pm, 2), 8))
        # Keep double-buffered x/out tiles + resident weight within scoped VMEM.
        while tm_eff > 64 and w_tile_bytes + 2 * tm_eff * (k_eff * x_item + tn_eff * o_item) > _VMEM_BUDGET:
            tm_eff = _round_up(tm_eff // 2, 8)
    m_tiles = pl.cdiv(pm, tm_eff)

    # CostEstimate with the packed shapes; the weight is resident, so count it once.
    cost = pl.CostEstimate(
        flops=2 * pm * k_eff * n_eff,
        transcendentals=0,
        bytes_accessed=(n_tiles * pm * k_eff * x_item   # x re-read once per N tile
                        + k_eff * n_eff * w_item        # resident weight, read once
                        + pm * n_eff * o_item),
    )

    out = pl.pallas_call(
        _upsampler_kernel,
        out_shape=jax.ShapeDtypeStruct((pm, n_eff), out_dtype),
        grid_spec=pltpu.PrefetchScalarGridSpec(
            num_scalar_prefetch=0,
            grid=(n_tiles, m_tiles),  # M innermost -> weight resident across M tiles
            in_specs=[
                pl.BlockSpec((tm_eff, k_eff), lambda j, i: (i, 0)),
                pl.BlockSpec((k_eff, tn_eff), lambda j, i: (0, j)),
            ],
            out_specs=pl.BlockSpec((tm_eff, tn_eff), lambda j, i: (i, j)),
        ),
        compiler_params=pltpu.CompilerParams(
            dimension_semantics=("parallel", "parallel"),
        ),
        cost_estimate=cost,
    )(xp, w_packed)

    # Unpack channels; the slice is only emitted when M had to be padded to `pack`.
    y = out.reshape(m_pad, cout)
    if m_pad != m:
        y = y[:m]
    return y.reshape(*lead, cout)


if __name__ == "__main__":
    key = jax.random.PRNGKey(0)
    kx, kw = jax.random.split(key)

    # Module config: UpSampler(c_in=32, reduction=1) -> Linear(32 -> 32, bias=False) + ReLU
    c_in, reduction = 32, 1
    in_features = c_in // reduction
    batch, seq = 2, 8

    x = jax.random.normal(kx, (batch, seq, in_features), dtype=jnp.float32)
    # PyTorch weight layout: (c_in, in_features).
    w = jax.random.normal(kw, (c_in, in_features), dtype=jnp.float32) * 0.05

    ref = jnp.maximum(jnp.einsum("bsi,oi->bso", x, w), 0.0)

    # --- f32 path: exact check against the reference.
    params_f32 = prepare_upsampler_params(w, compute_dtype=jnp.float32)
    out_f32 = jax.block_until_ready(upsampler_forward(params_f32, x))
    assert out_f32.shape == (batch, seq, c_in)
    assert jnp.allclose(out_f32, ref, atol=1e-5, rtol=1e-5)

    # --- bf16 path (default): halves HBM traffic; activations supplied in bf16
    # so the wrapper performs no extra cast pass.
    params_bf16 = prepare_upsampler_params(w)  # bf16 weight, packed once
    x_bf16 = x.astype(jnp.bfloat16)
    out_bf16 = jax.block_until_ready(upsampler_forward(params_bf16, x_bf16))
    assert out_bf16.shape == (batch, seq, c_in)
    assert out_bf16.dtype == jnp.bfloat16
    assert jnp.allclose(out_bf16.astype(jnp.float32), ref, atol=3e-2, rtol=3e-2)

    print("KERNEL_OK")
</pallas_src>

<mosaic_0001>
module attributes {stable_mosaic.version = 11 : i64} {
  func.func @_upsampler_kernel(%arg0: i32, %arg1: i32, %arg2: memref<4x128xf32, #tpu.memory_space<vmem>>, %arg3: memref<128x128xf32, #tpu.memory_space<vmem>>, %arg4: memref<4x128xf32, #tpu.memory_space<vmem>>) attributes {dimension_semantics = [#tpu.dimension_semantics<parallel>, #tpu.dimension_semantics<parallel>], iteration_bounds = array<i64: 1, 1>, scalar_prefetch = 0 : i64, scratch_operands = 0 : i64, tpu.core_type = #tpu.core_type<tc>, window_params = [{transform_indices = @transform_0, window_bounds = array<i64: 4, 128>}, {transform_indices = @transform_1, window_bounds = array<i64: 128, 128>}, {transform_indices = @transform_2, window_bounds = array<i64: 4, 128>}]} {
    %c0 = arith.constant 0 : index
    %c0_0 = arith.constant 0 : index
    %0 = vector.load %arg2[%c0, %c0_0] : memref<4x128xf32, #tpu.memory_space<vmem>>, vector<4x128xf32>
    %c0_1 = arith.constant 0 : index
    %c0_2 = arith.constant 0 : index
    %1 = vector.load %arg3[%c0_1, %c0_2] : memref<128x128xf32, #tpu.memory_space<vmem>>, vector<128x128xf32>
    %cst = arith.constant dense<0.000000e+00> : vector<4x128xf32>
    %2 = tpu.matmul %0, %1, %cst {dimension_numbers = #tpu.dot_dimension_numbers<[1], [0], [0], [1], [0, 0, 1, 1], [], []>} : vector<4x128xf32>, vector<128x128xf32>, vector<4x128xf32> -> vector<4x128xf32>
    %cst_3 = arith.constant 0.000000e+00 : f32
    %3 = vector.broadcast %cst_3 : f32 to vector<4x128xf32>
    %4 = arith.maximumf %2, %3 : vector<4x128xf32>
    %c0_4 = arith.constant 0 : index
    %c0_5 = arith.constant 0 : index
    %5 = vector.load %arg4[%c0_4, %c0_5] : memref<4x128xf32, #tpu.memory_space<vmem>>, vector<4x128xf32>
    tpu.vector_store %arg4[%c0_4, %c0_5], %4 {strides = array<i32>} : memref<4x128xf32, #tpu.memory_space<vmem>>, vector<4x128xf32>,
    return
  }
  func.func @transform_0(%arg0: i32, %arg1: i32) -> (i32, i32) {
    %c0_i32 = arith.constant 0 : i32
    %c0_i32_0 = arith.constant 0 : i32
    return %arg1, %c0_i32 : i32, i32
  }
  func.func @transform_1(%arg0: i32, %arg1: i32) -> (i32, i32) {
    %c0_i32 = arith.constant 0 : i32
    %c0_i32_0 = arith.constant 0 : i32
    return %c0_i32, %arg0 : i32, i32
  }
  func.func @transform_2(%arg0: i32, %arg1: i32) -> (i32, i32) {
    %c0_i32 = arith.constant 0 : i32
    return %arg1, %arg0 : i32, i32
  }
}

</mosaic_0001>

<llo_original>
// kernel: tpu_custom_call.1
$region0: #{tpu_custom_call.1}
  #allocation0 [shape = 'u32[]', space=smem, size = 0x4, offset = 0x4, fixed_abs, tag = 'smem constant byte address 0x4 - core index']
  #allocation1 [shape = 'u32[72,128]{1,0:T(1,128)}', space=vmem, size = 0x9000, scoped, tag = 'internal scratch']
  %s0 = inlined_call_operand.hbm [shape: f32[4,128], index: 0, kind: input, shape index: {}]
  %s1 = inlined_call_operand.hbm [shape: f32[128,128], index: 1, kind: input, shape index: {}]
  %s2 = inlined_call_operand.hbm [shape: f32[4,128], index: 2, kind: output, shape index: {}]
  %s3 = sld [smem:[#allocation0]]
  $region26: #{tpu_custom_call.1} parent=0
    _
  %s5 = ssub.s32 1, %s3
  %s6 = scalar_select 0, %s5, %s3
  $region1: #{tpu_custom_call.1} parent=0
    #allocation2 [shape = 'u8[2048]{0}', space=vmem, size = 0x800, scoped, tag = 'input window, operand 0, single buffered']
    #allocation3 [shape = 's32[1]{0}', space=sflag, size = 0x4, scoped, tag = 'scoped memory for tpu_custom_call.1']
    #allocation4 [shape = 's32[1]{0}', space=sflag, size = 0x4, scoped, tag = 'scoped memory for tpu_custom_call.1']
    #allocation5 [shape = 'u8[65536]{0}', space=vmem, size = 0x10000, scoped, tag = 'input window, operand 1, single buffered']
    #allocation6 [shape = 's32[1]{0}', space=sflag, size = 0x4, scoped, tag = 'scoped memory for tpu_custom_call.1']
    #allocation7 [shape = 'u8[2048]{0}', space=vmem, size = 0x800, scoped, tag = 'output window, operand 0, single buffered']
    %7 = vsyncpa [#allocation3], 0
    %8 = vsyncpa [#allocation6], 0
    %9 = vsyncpa [#allocation4], 0
    // Predicated region
    $region2: #{tpu_custom_call.1} parent=1 // pred_check
      _
    $region3: #{tpu_custom_call.1} parent=1 // pred_check_branch
      %11 = sbr.rel (0) target = $region5
    $region4: #{tpu_custom_call.1} parent=1 // pred_region
      %13 = vsyncadd [#allocation3], 0
      %s15 = sshll.u32 %s0, 4
      %s16 = int_to_ptr.hbm [resolvable:$true] %s15
      %s17 = sshll.u32 [#allocation2], 4
      %s18 = int_to_ptr.vmem [resolvable:$true] %s17
      %20 = dma.hbm_to_vmem [thread:$0]  %s16, 64, %s18, [#allocation3]
    $region5: #{tpu_custom_call.1} parent=1 // pred_fallthru
      _
    // Predicated region
    $region6: #{tpu_custom_call.1} parent=1 // pred_check
      _
    $region7: #{tpu_custom_call.1} parent=1 // pred_check_branch
      %22 = sbr.rel (0) target = $region9
    $region8: #{tpu_custom_call.1} parent=1 // pred_region
      %24 = vsyncadd [#allocation6], 0
      %s25 = sshll.u32 %s1, 4
      %s26 = int_to_ptr.hbm [resolvable:$true] %s25
      %s27 = sshll.u32 [#allocation5], 4
      %s28 = int_to_ptr.vmem [resolvable:$true] %s27
      %33 = dma.hbm_to_vmem [thread:$0]  %s26, 2048, %s28, [#allocation6], 128, 128, 8
    $region9: #{tpu_custom_call.1} parent=1 // pred_fallthru
      _
    // Predicated region
    $region10: #{tpu_custom_call.1} parent=1 // pred_check
      _
    $region11: #{tpu_custom_call.1} parent=1 // pred_check_branch
      %35 = sbr.rel (0) target = $region13
    $region12: #{tpu_custom_call.1} parent=1 // pred_region
      %37 = dma.done [#allocation3], 64
    $region13: #{tpu_custom_call.1} parent=1 // pred_fallthru
      _
    // Predicated region
    $region14: #{tpu_custom_call.1} parent=1 // pred_check
      _
    $region15: #{tpu_custom_call.1} parent=1 // pred_check_branch
      %39 = sbr.rel (0) target = $region17
    $region16: #{tpu_custom_call.1} parent=1 // pred_region
      %41 = dma.done [#allocation6], 2048
    $region17: #{tpu_custom_call.1} parent=1 // pred_fallthru
      _
    %v42 = vld [vmem:[#allocation2] sm:$0xf]
    %v43 = vld [vmem:[#allocation5] sm:$0xff]
    %v44 = vld [vmem:[#allocation5 + $0x8] sm:$0xff]
    %v45 = vld [vmem:[#allocation5 + $0x10] sm:$0xff]
    %v46 = vld [vmem:[#allocation5 + $0x18] sm:$0xff]
    %v47 = vld [vmem:[#allocation5 + $0x20] sm:$0xff]
    %v48 = vld [vmem:[#allocation5 + $0x28] sm:$0xff]
    %v49 = vld [vmem:[#allocation5 + $0x30] sm:$0xff]
    %v50 = vld [vmem:[#allocation5 + $0x38] sm:$0xff]
    %v51 = vld [vmem:[#allocation5 + $0x40] sm:$0xff]
    %v52 = vld [vmem:[#allocation5 + $0x48] sm:$0xff]
    %v53 = vld [vmem:[#allocation5 + $0x50] sm:$0xff]
    %v54 = vld [vmem:[#allocation5 + $0x58] sm:$0xff]
    %v55 = vld [vmem:[#allocation5 + $0x60] sm:$0xff]
    %v56 = vld [vmem:[#allocation5 + $0x68] sm:$0xff]
    %v57 = vld [vmem:[#allocation5 + $0x70] sm:$0xff]
    %v58 = vld [vmem:[#allocation5 + $0x78] sm:$0xff]
    %59 = vmatpush.msra.mxu0 %v58
    %60 = vmatpush.msra.mxu0 %v57
    %61 = vmatpush.msra.mxu0 %v56
    %62 = vmatpush.msra.mxu0 %v55
    %63 = vmatpush.msra.mxu0 %v54
    %64 = vmatpush.msra.mxu0 %v53
    %65 = vmatpush.msra.mxu0 %v52
    %66 = vmatpush.msra.mxu0 %v51
    %67 = vmatpush.msra.mxu0 %v50
    %68 = vmatpush.msra.mxu0 %v49
    %69 = vmatpush.msra.mxu0 %v48
    %70 = vmatpush.msra.mxu0 %v47
    %71 = vmatpush.msra.mxu0 %v46
    %72 = vmatpush.msra.mxu0 %v45
    %73 = vmatpush.msra.mxu0 %v44
    %74 = vmatpush.msra.mxu0 %v43
    %75 = vmatmul.f32.gmra.mxu0 %v42
    %v76 = vpop.f32.mrf.mxu0
    %v77 = vadd.f32 0.0, %v76
    %78 = vdwg.mxu0
    %v79 = vmax.f32 %v77, 0.0
    %80 = vst [vmem:[#allocation7] sm:$0xf] %v79
    // Predicated region
    $region18: #{tpu_custom_call.1} parent=1 // pred_check
      _
    $region19: #{tpu_custom_call.1} parent=1 // pred_check_branch
      %82 = sbr.rel (0) target = $region21
    $region20: #{tpu_custom_call.1} parent=1 // pred_region
      %84 = vsyncadd [#allocation4], 0
      %s86 = sshll.u32 [#allocation7], 4
      %s87 = int_to_ptr.vmem [resolvable:$true] %s86
      %s88 = sshll.u32 %s2, 4
      %s89 = int_to_ptr.hbm [resolvable:$true] %s88
      %91 = dma.vmem_to_hbm [thread:$0]  %s87, 64, %s89, [#allocation4]
    $region21: #{tpu_custom_call.1} parent=1 // pred_fallthru
      _
    // Predicated region
    $region22: #{tpu_custom_call.1} parent=1 // pred_check
      _
    $region23: #{tpu_custom_call.1} parent=1 // pred_check_branch
      %93 = sbr.rel (0) target = $region25
    $region24: #{tpu_custom_call.1} parent=1 // pred_region
      %95 = dma.done [#allocation4], 64
    $region25: #{tpu_custom_call.1} parent=1 // pred_fallthru
      _
    %96 = vsyncpa [#allocation3], 1
    %97 = vsyncpa [#allocation6], 1
    %98 = vsyncpa [#allocation4], 1

</llo_original>
